<compile_context>
chip_gen: v6e
topology: v6e:2x2x1
jax: 0.10.0
libtpu: 0.0.40
codegen_flags: <defaults>
</compile_context>

<pallas_src>
import jax
import jax.numpy as jnp
from jax.experimental import pallas as pl
from jax.experimental.pallas import tpu as pltpu


def _mlp_kernel(x_ref, w1_ref, b1_ref, w2_ref, b2_ref, o_ref):
    x = x_ref[...]                                           # (TN, in_dim) f32
    # fc1 + ReLU (MXU matmul, f32 accumulation)
    h = jnp.dot(x, w1_ref[...], preferred_element_type=jnp.float32) + b1_ref[...]
    h = jnp.maximum(h, 0.0)                                  # (TN, H)
    # TODO(synk): dropout is identity in eval/inference mode; no stochastic masking here.
    # fc2 computed transposed so the result is lane-dense: (1,H) . (TN,H)^T -> (1, TN)
    z = jax.lax.dot_general(
        w2_ref[...], h,
        dimension_numbers=(((1,), (1,)), ((), ())),
        preferred_element_type=jnp.float32)                  # (1, TN)
    z = z + b2_ref[0, 0]                                     # scalar bias from SMEM
    # numerically-stable softplus: max(z, 0) + log1p(exp(-|z|)); exp arg <= 0 so no overflow
    t = jnp.maximum(z, 0.0) + jnp.log1p(jnp.exp(-jnp.abs(z)))
    o_ref[...] = t.astype(o_ref.dtype)


def simple_temp_mlp(x, w1, b1, w2, b2, *, tn_max=8192):
    """x: (N, in_dim) f32; w1: (in_dim, H); b1: (1, H) or (H,);
    w2: (1, H) (PyTorch fc2.weight layout) or (H, 1); b2: scalar-like.
    Returns t of shape (N,) == softplus(fc2(relu(fc1(x)))).squeeze(-1)."""
    x = jnp.asarray(x, jnp.float32)
    N, in_dim = x.shape
    H = w1.shape[1] if w1.ndim == 2 else w1.shape[0]
    w1 = jnp.asarray(w1, jnp.float32).reshape(in_dim, H)
    b1 = jnp.asarray(b1, jnp.float32).reshape(1, H)
    w2 = jnp.asarray(w2, jnp.float32).reshape(1, H)
    b2 = jnp.asarray(b2, jnp.float32).reshape(1, 1)

    # Node-axis tile size. Budget ~4 MiB for the x tile (double-buffered -> ~8 MiB, well
    # under every generation's scoped VMEM default, incl. v7x's 64 MiB physical).
    vmem_budget = 4 * 1024 * 1024
    tn_cap = max(128, (vmem_budget // (in_dim * 4)) // 128 * 128)
    tn_big = max(128, min(int(tn_max), tn_cap) // 128 * 128)
    if N <= tn_big:
        tn = N                      # single tile: block == full array, no (8,128) issue
        num_tiles = 1
    else:
        tn = tn_big                 # multiple of 128; ragged tail handled by Pallas
        num_tiles = pl.cdiv(N, tn)

    flops = 2 * N * (in_dim * H + H)
    bytes_accessed = (N * in_dim + N + in_dim * H + 2 * H + 1) * 4

    out = pl.pallas_call(
        _mlp_kernel,
        out_shape=jax.ShapeDtypeStruct((1, N), jnp.float32),
        grid_spec=pltpu.PrefetchScalarGridSpec(
            num_scalar_prefetch=0,
            grid=(num_tiles,),
            in_specs=[
                pl.BlockSpec((tn, in_dim), lambda i: (i, 0)),       # x: streamed per tile
                pl.BlockSpec((in_dim, H), lambda i: (0, 0)),        # W1: VMEM-resident
                pl.BlockSpec((1, H), lambda i: (0, 0)),             # b1: VMEM-resident
                pl.BlockSpec((1, H), lambda i: (0, 0)),             # W2 (1,H): VMEM-resident
                pl.BlockSpec(memory_space=pltpu.MemorySpace.SMEM),  # b2 scalar in SMEM
            ],
            out_specs=pl.BlockSpec((1, tn), lambda i: (0, i)),      # lane-dense output slab
        ),
        compiler_params=pltpu.CompilerParams(
            dimension_semantics=("parallel",),      # row tiles shard across TCs on v7x
        ),
        cost_estimate=pl.CostEstimate(
            flops=flops, transcendentals=2 * N, bytes_accessed=bytes_accessed),
    )(x, w1, b1, w2, b2)

    return out[0]   # (N,) == squeeze(-1)


def init_params(key, in_dim, hidden_dim=16):
    """Deterministic init mimicking torch.nn.Linear (uniform +-1/sqrt(fan_in)).
    w1: (in_dim, H) = fc1.weight^T; b1: (1, H); w2: (1, H) = fc2.weight; b2: (1, 1)."""
    k1, k2, k3, k4 = jax.random.split(key, 4)
    bound1 = 1.0 / jnp.sqrt(in_dim)
    bound2 = 1.0 / jnp.sqrt(hidden_dim)
    w1 = jax.random.uniform(k1, (in_dim, hidden_dim), jnp.float32, -bound1, bound1)
    b1 = jax.random.uniform(k2, (1, hidden_dim), jnp.float32, -bound1, bound1)
    w2 = jax.random.uniform(k3, (1, hidden_dim), jnp.float32, -bound2, bound2)
    b2 = jax.random.uniform(k4, (1, 1), jnp.float32, -bound2, bound2)
    return w1, b1, w2, b2


if __name__ == "__main__":
    key = jax.random.PRNGKey(0)
    kx, kp, kx2 = jax.random.split(key, 3)

    # Small shapes consistent with the module: 8 nodes, 32 input features, hidden 16.
    N, in_dim, hidden_dim = 8, 32, 16
    x = jax.random.normal(kx, (N, in_dim), jnp.float32)
    w1, b1, w2, b2 = init_params(kp, in_dim, hidden_dim)

    def ref(xx):
        h = jnp.maximum(xx @ w1 + b1, 0.0)
        z = h @ w2.T + b2
        return (jnp.maximum(z, 0.0) + jnp.log1p(jnp.exp(-jnp.abs(z))))[:, 0]

    t = jax.block_until_ready(simple_temp_mlp(x, w1, b1, w2, b2))
    assert t.shape == (N,)
    assert jnp.allclose(t, ref(x), atol=1e-5, rtol=1e-5)
    assert bool(jnp.all(t > 0))          # softplus output is strictly positive

    # Exercise the multi-tile path with a ragged tail (300 = 2*128 + 44), no wrapper pad.
    N2 = 300
    x2 = jax.random.normal(kx2, (N2, in_dim), jnp.float32)
    t2 = jax.block_until_ready(simple_temp_mlp(x2, w1, b1, w2, b2, tn_max=128))
    assert t2.shape == (N2,)
    assert jnp.allclose(t2, ref(x2), atol=1e-5, rtol=1e-5)
    assert bool(jnp.all(t2 > 0))

    print("KERNEL_OK")
</pallas_src>

<mosaic_0001>
module attributes {stable_mosaic.version = 11 : i64} {
  func.func @_mlp_kernel(%arg0: i32, %arg1: memref<8x32xf32, #tpu.memory_space<vmem>>, %arg2: memref<32x16xf32, #tpu.memory_space<vmem>>, %arg3: memref<1x16xf32, #tpu.memory_space<vmem>>, %arg4: memref<1x16xf32, #tpu.memory_space<vmem>>, %arg5: memref<1x1xf32, #tpu.memory_space<smem>>, %arg6: memref<1x8xf32, #tpu.memory_space<vmem>>) attributes {dimension_semantics = [#tpu.dimension_semantics<parallel>], iteration_bounds = array<i64: 1>, scalar_prefetch = 0 : i64, scratch_operands = 0 : i64, tpu.core_type = #tpu.core_type<tc>, window_params = [{transform_indices = @transform_0, window_bounds = array<i64: 8, 32>}, {pipeline_mode = #tpu.pipeline_mode<synchronous>, transform_indices = @transform_1, window_bounds = array<i64: 32, 16>}, {pipeline_mode = #tpu.pipeline_mode<synchronous>, transform_indices = @transform_2, window_bounds = array<i64: 1, 16>}, {pipeline_mode = #tpu.pipeline_mode<synchronous>, transform_indices = @transform_3, window_bounds = array<i64: 1, 16>}, {transform_indices = @transform_4, window_bounds = array<i64: 1, 1>}, {transform_indices = @transform_5, window_bounds = array<i64: 1, 8>}]} {
    %c0 = arith.constant 0 : index
    %c0_0 = arith.constant 0 : index
    %0 = vector.load %arg1[%c0, %c0_0] : memref<8x32xf32, #tpu.memory_space<vmem>>, vector<8x32xf32>
    %c0_1 = arith.constant 0 : index
    %c0_2 = arith.constant 0 : index
    %1 = vector.load %arg2[%c0_1, %c0_2] : memref<32x16xf32, #tpu.memory_space<vmem>>, vector<32x16xf32>
    %cst = arith.constant dense<0.000000e+00> : vector<8x16xf32>
    %2 = tpu.matmul %0, %1, %cst {dimension_numbers = #tpu.dot_dimension_numbers<[1], [0], [0], [1], [0, 0, 1, 1], [], []>} : vector<8x32xf32>, vector<32x16xf32>, vector<8x16xf32> -> vector<8x16xf32>
    %c0_3 = arith.constant 0 : index
    %c0_4 = arith.constant 0 : index
    %3 = vector.load %arg3[%c0_3, %c0_4] : memref<1x16xf32, #tpu.memory_space<vmem>>, vector<1x16xf32>
    %4 = vector.broadcast %3 : vector<1x16xf32> to vector<8x16xf32>
    %5 = arith.addf %2, %4 : vector<8x16xf32>
    %cst_5 = arith.constant 0.000000e+00 : f32
    %6 = vector.broadcast %cst_5 : f32 to vector<8x16xf32>
    %7 = arith.maximumf %5, %6 : vector<8x16xf32>
    %c0_6 = arith.constant 0 : index
    %c0_7 = arith.constant 0 : index
    %8 = vector.load %arg4[%c0_6, %c0_7] : memref<1x16xf32, #tpu.memory_space<vmem>>, vector<1x16xf32>
    %cst_8 = arith.constant dense<0.000000e+00> : vector<1x8xf32>
    %9 = tpu.matmul %8, %7, %cst_8 {dimension_numbers = #tpu.dot_dimension_numbers<[1], [1], [0], [0], [0, 0, 1, 0], [], []>} : vector<1x16xf32>, vector<8x16xf32>, vector<1x8xf32> -> vector<1x8xf32>
    %c0_9 = arith.constant 0 : index
    %c0_10 = arith.constant 0 : index
    %10 = memref.load %arg5[%c0_9, %c0_10] : memref<1x1xf32, #tpu.memory_space<smem>>
    %11 = vector.broadcast %10 : f32 to vector<1x8xf32>
    %12 = arith.addf %9, %11 : vector<1x8xf32>
    %cst_11 = arith.constant 0.000000e+00 : f32
    %13 = vector.broadcast %cst_11 : f32 to vector<1x8xf32>
    %14 = arith.maximumf %12, %13 : vector<1x8xf32>
    %15 = math.absf %12 : vector<1x8xf32>
    %cst_12 = arith.constant 0.000000e+00 : f32
    %16 = vector.broadcast %cst_12 : f32 to vector<1x8xf32>
    %17 = arith.subf %16, %15 : vector<1x8xf32>
    %18 = math.exp %17 : vector<1x8xf32>
    %19 = math.log1p %18 : vector<1x8xf32>
    %20 = arith.addf %14, %19 : vector<1x8xf32>
    %c0_13 = arith.constant 0 : index
    %c0_14 = arith.constant 0 : index
    %21 = vector.load %arg6[%c0_13, %c0_14] : memref<1x8xf32, #tpu.memory_space<vmem>>, vector<1x8xf32>
    tpu.vector_store %arg6[%c0_13, %c0_14], %20 {strides = array<i32>} : memref<1x8xf32, #tpu.memory_space<vmem>>, vector<1x8xf32>,
    return
  }
  func.func @transform_0(%arg0: i32) -> (i32, i32) {
    %c0_i32 = arith.constant 0 : i32
    %c0_i32_0 = arith.constant 0 : i32
    return %arg0, %c0_i32 : i32, i32
  }
  func.func @transform_1(%arg0: i32) -> (i32, i32) {
    %c0_i32 = arith.constant 0 : i32
    %c0_i32_0 = arith.constant 0 : i32
    %c0_i32_1 = arith.constant 0 : i32
    return %c0_i32, %c0_i32_0 : i32, i32
  }
  func.func @transform_2(%arg0: i32) -> (i32, i32) {
    %c0_i32 = arith.constant 0 : i32
    %c0_i32_0 = arith.constant 0 : i32
    %c0_i32_1 = arith.constant 0 : i32
    return %c0_i32, %c0_i32_0 : i32, i32
  }
  func.func @transform_3(%arg0: i32) -> (i32, i32) {
    %c0_i32 = arith.constant 0 : i32
    %c0_i32_0 = arith.constant 0 : i32
    %c0_i32_1 = arith.constant 0 : i32
    return %c0_i32, %c0_i32_0 : i32, i32
  }
  func.func @transform_4(%arg0: i32) -> (i32, i32) {
    %c0_i32 = arith.constant 0 : i32
    %c0_i32_0 = arith.constant 0 : i32
    %c0_i32_1 = arith.constant 0 : i32
    return %c0_i32, %c0_i32_0 : i32, i32
  }
  func.func @transform_5(%arg0: i32) -> (i32, i32) {
    %c0_i32 = arith.constant 0 : i32
    %c0_i32_0 = arith.constant 0 : i32
    return %c0_i32, %arg0 : i32, i32
  }
}

</mosaic_0001>

<llo_original>
// kernel: tpu_custom_call.1
$region0: #{tpu_custom_call.1}
  #allocation0 [shape = 'u32[]', space=smem, size = 0x4, offset = 0x4, fixed_abs, tag = 'smem constant byte address 0x4 - core index']
  #allocation1 [shape = 'u32[144,128]{1,0:T(1,128)}', space=vmem, size = 0x12000, scoped, tag = 'internal scratch']
  #allocation2 [shape = 'f32[1,1]{1,0:T(1,128)S(6)}', space=smem, size = 0x200, scoped, tag = 'scoped memory for tpu_custom_call.1']
  %s0 = inlined_call_operand.vmem [shape: f32[8,32], index: 0, kind: input, shape index: {}]
  %s1 = inlined_call_operand.vmem [shape: f32[32,16], index: 1, kind: input, shape index: {}]
  %s2 = inlined_call_operand.vmem [shape: f32[1,16], index: 2, kind: input, shape index: {}]
  %s3 = inlined_call_operand.vmem [shape: f32[1,16], index: 3, kind: input, shape index: {}]
  %s4 = inlined_call_operand.<no memory space> [shape: f32[1,1], index: 4, kind: input, shape index: {}]
  %s5 = inlined_call_operand.hbm [shape: f32[1,8], index: 5, kind: output, shape index: {}]
  %s6 = sld [smem:[#allocation0]]
  $region30: #{tpu_custom_call.1} parent=0
    _
  %s8 = ssub.s32 1, %s6
  %s9 = scalar_select 0, %s8, %s6
  %10 = sst [smem:[#allocation2]] %s4
  $region1: #{tpu_custom_call.1} parent=0
    #allocation3 [shape = 'u8[512]{0}', space=vmem, size = 0x400, scoped, tag = 'output window, operand 0, single buffered']
    #allocation4 [shape = 's32[1]{0}', space=sflag, size = 0x4, scoped, tag = 'scoped memory for tpu_custom_call.1']
    %11 = vsyncpa [#allocation4], 0
    // Predicated region
    $region2: #{tpu_custom_call.1} parent=1 // pred_check
      _
    $region3: #{tpu_custom_call.1} parent=1 // pred_check_branch
      %13 = sbr.rel (0) target = $region5
    $region4: #{tpu_custom_call.1} parent=1 // pred_region
      _
    $region5: #{tpu_custom_call.1} parent=1 // pred_fallthru
      _
    // Predicated region
    $region6: #{tpu_custom_call.1} parent=1 // pred_check
      _
    $region7: #{tpu_custom_call.1} parent=1 // pred_check_branch
      %15 = sbr.rel (0) target = $region9
    $region8: #{tpu_custom_call.1} parent=1 // pred_region
      _
    $region9: #{tpu_custom_call.1} parent=1 // pred_fallthru
      _
    // Predicated region
    $region10: #{tpu_custom_call.1} parent=1 // pred_check
      _
    $region11: #{tpu_custom_call.1} parent=1 // pred_check_branch
      %17 = sbr.rel (0) target = $region13
    $region12: #{tpu_custom_call.1} parent=1 // pred_region
      _
    $region13: #{tpu_custom_call.1} parent=1 // pred_fallthru
      _
    // Predicated region
    $region14: #{tpu_custom_call.1} parent=1 // pred_check
      _
    $region15: #{tpu_custom_call.1} parent=1 // pred_check_branch
      %19 = sbr.rel (0) target = $region17
    $region16: #{tpu_custom_call.1} parent=1 // pred_region
      _
    $region17: #{tpu_custom_call.1} parent=1 // pred_fallthru
      _
    // Predicated region
    $region18: #{tpu_custom_call.1} parent=1 // pred_check
      _
    $region19: #{tpu_custom_call.1} parent=1 // pred_check_branch
      %21 = sbr.rel (0) target = $region21
    $region20: #{tpu_custom_call.1} parent=1 // pred_region
      _
    $region21: #{tpu_custom_call.1} parent=1 // pred_fallthru
      _
    %v22 = vld [vmem:[%s0] sm:$0xff]
    %v23 = vld [vmem:[%s1] sm:$0xff]
    %v24 = vld [vmem:[%s1 + $0x8] sm:$0xff]
    %v25 = vld [vmem:[%s1 + $0x10] sm:$0xff]
    %v26 = vld [vmem:[%s1 + $0x18] sm:$0xff]
    %v27 = vld [vmem:[%s2] sm:$0x1]
    %v29 = vlaneseq
    %v30 = vshrl.u32 %v29, 7
    %v31 = vsub.s32 0, %v30
    %v32 = vrot.slane %v27, %v31
    %vm34 = vcmask 261120
    %v36 = vsel %vm34, %v22, 0
    %38 = vmatprep.subr.mxu0 0.0
    %39 = vmatpush1.msra.mxu0 0.0
    %40 = vmatprep.subr.mxu0 0.0
    %41 = vmatpush1.msra.mxu0 0.0
    %42 = vmatprep.subr.mxu0 0.0
    %43 = vmatpush1.msra.mxu0 0.0
    %44 = vmatprep.subr.mxu0 0.0
    %45 = vmatpush1.msra.mxu0 0.0
    %46 = vmatprep.subr.mxu0 0.0
    %47 = vmatpush1.msra.mxu0 0.0
    %48 = vmatprep.subr.mxu0 0.0
    %49 = vmatpush1.msra.mxu0 0.0
    %50 = vmatprep.subr.mxu0 0.0
    %51 = vmatpush1.msra.mxu0 0.0
    %52 = vmatprep.subr.mxu0 0.0
    %53 = vmatpush1.msra.mxu0 0.0
    %54 = vmatprep.subr.mxu0 0.0
    %55 = vmatpush1.msra.mxu0 0.0
    %56 = vmatprep.subr.mxu0 0.0
    %57 = vmatpush1.msra.mxu0 0.0
    %58 = vmatprep.subr.mxu0 0.0
    %59 = vmatpush1.msra.mxu0 0.0
    %60 = vmatprep.subr.mxu0 0.0
    %61 = vmatpush1.msra.mxu0 0.0
    %62 = vmatprep.subr.mxu0 0.0
    %63 = vmatpush1.msra.mxu0 %v26
    %64 = vmatprep.subr.mxu0 0.0
    %65 = vmatpush1.msra.mxu0 %v25
    %66 = vmatprep.subr.mxu0 0.0
    %67 = vmatpush1.msra.mxu0 %v24
    %68 = vmatprep.subr.mxu0 0.0
    %69 = vmatpush1.msra.mxu0 %v23
    %70 = vmatprep.subr.mxu0 0.0
    %71 = vmatpush2.msra.mxu0 0.0
    %72 = vmatprep.subr.mxu0 0.0
    %73 = vmatpush2.msra.mxu0 0.0
    %74 = vmatprep.subr.mxu0 0.0
    %75 = vmatpush2.msra.mxu0 0.0
    %76 = vmatprep.subr.mxu0 0.0
    %77 = vmatpush2.msra.mxu0 0.0
    %78 = vmatprep.subr.mxu0 0.0
    %79 = vmatpush2.msra.mxu0 0.0
    %80 = vmatprep.subr.mxu0 0.0
    %81 = vmatpush2.msra.mxu0 0.0
    %82 = vmatprep.subr.mxu0 0.0
    %83 = vmatpush2.msra.mxu0 0.0
    %84 = vmatprep.subr.mxu0 0.0
    %85 = vmatpush2.msra.mxu0 0.0
    %86 = vmatprep.subr.mxu0 0.0
    %87 = vmatpush2.msra.mxu0 0.0
    %88 = vmatprep.subr.mxu0 0.0
    %89 = vmatpush2.msra.mxu0 0.0
    %90 = vmatprep.subr.mxu0 0.0
    %91 = vmatpush2.msra.mxu0 0.0
    %92 = vmatprep.subr.mxu0 0.0
    %93 = vmatpush2.msra.mxu0 0.0
    %94 = vmatprep.subr.mxu0 0.0
    %95 = vmatpush2.msra.mxu0 0.0
    %96 = vmatprep.subr.mxu0 0.0
    %97 = vmatpush2.msra.mxu0 0.0
    %98 = vmatprep.subr.mxu0 0.0
    %99 = vmatpush2.msra.mxu0 0.0
    %100 = vmatprep.subr.mxu0 0.0
    %101 = vmatpush2.msra.mxu0 0.0
    %102 = vmatprep.mubr.f32.mxu0 0.0
    %103 = vmatmul.mubr.f32.gmra.mxu0 %v36
    %v104 = vpop.f32.mrf.mxu0
    %v105 = vadd.f32 %v32, %v104
    %v106 = vpop.f32.mrf.mxu0
    %107 = vdwg.mxu0
    %v108 = vmax.f32 %v105, 0.0
    %v109 = vld [vmem:[%s3] sm:$0x1]
    %s110 = sld [smem:[#allocation2]]
    %v111 = vstv %s110
    %vm112 = vcmask 130048
    %v114 = vsel %vm112, %v109, 0
    %v117 = vsel %vm112, %v108, 0
    %119 = vmatprep.subr.mxu0 0.0
    %120 = vmatpush1.xpose.msra.mxu0 0.0
    %121 = vmatprep.subr.mxu0 0.0
    %122 = vmatpush1.xpose.msra.mxu0 0.0
    %123 = vmatprep.subr.mxu0 0.0
    %124 = vmatpush1.xpose.msra.mxu0 0.0
    %125 = vmatprep.subr.mxu0 0.0
    %126 = vmatpush1.xpose.msra.mxu0 0.0
    %127 = vmatprep.subr.mxu0 0.0
    %128 = vmatpush1.xpose.msra.mxu0 0.0
    %129 = vmatprep.subr.mxu0 0.0
    %130 = vmatpush1.xpose.msra.mxu0 0.0
    %131 = vmatprep.subr.mxu0 0.0
    %132 = vmatpush1.xpose.msra.mxu0 0.0
    %133 = vmatprep.subr.mxu0 0.0
    %134 = vmatpush1.xpose.msra.mxu0 0.0
    %135 = vmatprep.subr.mxu0 0.0
    %136 = vmatpush1.xpose.msra.mxu0 0.0
    %137 = vmatprep.subr.mxu0 0.0
    %138 = vmatpush1.xpose.msra.mxu0 0.0
    %139 = vmatprep.subr.mxu0 0.0
    %140 = vmatpush1.xpose.msra.mxu0 0.0
    %141 = vmatprep.subr.mxu0 0.0
    %142 = vmatpush1.xpose.msra.mxu0 0.0
    %143 = vmatprep.subr.mxu0 0.0
    %144 = vmatpush1.xpose.msra.mxu0 0.0
    %145 = vmatprep.subr.mxu0 0.0
    %146 = vmatpush1.xpose.msra.mxu0 0.0
    %147 = vmatprep.subr.mxu0 0.0
    %148 = vmatpush1.xpose.msra.mxu0 0.0
    %149 = vmatprep.subr.mxu0 0.0
    %150 = vmatpush1.xpose.msra.mxu0 %v117
    %151 = vmatprep.subr.mxu0 0.0
    %152 = vmatpush2.xpose.msra.mxu0 0.0
    %153 = vmatprep.subr.mxu0 0.0
    %154 = vmatpush2.xpose.msra.mxu0 0.0
    %155 = vmatprep.subr.mxu0 0.0
    %156 = vmatpush2.xpose.msra.mxu0 0.0
    %157 = vmatprep.subr.mxu0 0.0
    %158 = vmatpush2.xpose.msra.mxu0 0.0
    %159 = vmatprep.subr.mxu0 0.0
    %160 = vmatpush2.xpose.msra.mxu0 0.0
    %161 = vmatprep.subr.mxu0 0.0
    %162 = vmatpush2.xpose.msra.mxu0 0.0
    %163 = vmatprep.subr.mxu0 0.0
    %164 = vmatpush2.xpose.msra.mxu0 0.0
    %165 = vmatprep.subr.mxu0 0.0
    %166 = vmatpush2.xpose.msra.mxu0 0.0
    %167 = vmatprep.subr.mxu0 0.0
    %168 = vmatpush2.xpose.msra.mxu0 0.0
    %169 = vmatprep.subr.mxu0 0.0
    %170 = vmatpush2.xpose.msra.mxu0 0.0
    %171 = vmatprep.subr.mxu0 0.0
    %172 = vmatpush2.xpose.msra.mxu0 0.0
    %173 = vmatprep.subr.mxu0 0.0
    %174 = vmatpush2.xpose.msra.mxu0 0.0
    %175 = vmatprep.subr.mxu0 0.0
    %176 = vmatpush2.xpose.msra.mxu0 0.0
    %177 = vmatprep.subr.mxu0 0.0
    %178 = vmatpush2.xpose.msra.mxu0 0.0
    %179 = vmatprep.subr.mxu0 0.0
    %180 = vmatpush2.xpose.msra.mxu0 0.0
    %181 = vmatprep.subr.mxu0 0.0
    %182 = vmatpush2.xpose.msra.mxu0 0.0
    %183 = vmatprep.mubr.f32.mxu0 0.0
    %184 = vmatmul.mubr.f32.gmra.mxu0 %v114
    %v185 = vpop.f32.mrf.mxu0
    %v186 = vadd.f32 %v111, %v185
    %v187 = vpop.f32.mrf.mxu0
    %188 = vdwg.mxu0
    %v189 = vmax.f32 %v186, 0.0
    %v190 = vand.u32 2147483647, %v186
    %v191 = vsub.f32 0.0, %v190
    %v192 = vmul.f32 %v191, 1.442695
    %v193 = vpow.pop %v192
    %v194 = vadd.f32 %v193, 1.0
    %v195 = vlog2.pop %v194
    %v196 = vmul.f32 %v195, 0.6931472
    %v197 = vmul.f32 -0.5, %v193
    %v198 = vadd.f32 %v197, 1.0
    %v199 = vmul.f32 %v198, %v193
    %v200 = vand.u32 2147483647, %v193
    %vm201 = vcmp.lt.f32.partialorder %v200, 0.0004427343
    %v202 = vsel %vm201, %v199, %v196
    %v203 = vadd.f32 %v189, %v202
    %vm204 = vcmask 57344
    %205 = vst.msk [vmem:[#allocation3] sm:$0x1] %vm204, %v203
    // Predicated region
    $region22: #{tpu_custom_call.1} parent=1 // pred_check
      _
    $region23: #{tpu_custom_call.1} parent=1 // pred_check_branch
      %207 = sbr.rel (0) target = $region25
    $region24: #{tpu_custom_call.1} parent=1 // pred_region
      %s209 = ssub.s32 16, 16
      %210 = vsyncadd [#allocation4], %s209
      %s212 = sshll.u32 [#allocation3], 4
      %s213 = int_to_ptr.vmem [resolvable:$true] %s212
      %215 = dma.vmem_to_hbm [thread:$0]  %s213, 16, %s5, [#allocation4]
    $region25: #{tpu_custom_call.1} parent=1 // pred_fallthru
      _
    // Predicated region
    $region26: #{tpu_custom_call.1} parent=1 // pred_check
      _
    $region27: #{tpu_custom_call.1} parent=1 // pred_check_branch
      %217 = sbr.rel (0) target = $region29
    $region28: #{tpu_custom_call.1} parent=1 // pred_region
      %218 = dma.done [#allocation4], 16
    $region29: #{tpu_custom_call.1} parent=1 // pred_fallthru
      _
    %219 = vsyncpa [#allocation4], 1

</llo_original>
